<compile_context>
chip_gen: v7x
topology: tpu7x:2x2x1
jax: 0.10.0
libtpu: 0.0.40
codegen_flags: <defaults>
</compile_context>

<pallas_src>
import functools
import math

import jax
import jax.numpy as jnp
from jax.experimental import pallas as pl
from jax.experimental.pallas import tpu as pltpu


def _round_up(x, m):
    return ((x + m - 1) // m) * m


def _pick_tile(dim_p, desired, quantum):
    """Largest multiple of `quantum` that divides dim_p and is <= desired."""
    best = quantum
    t = quantum
    while t <= min(desired, dim_p):
        if dim_p % t == 0:
            best = t
        t += quantum
    return best


def _mal_kernel(x_ref, w_ref, uc_ref, us_ref, b_ref, o_ref):
    """One (m, n, k) grid step of the masked matmul.

    x_ref  : (Mt, Kt)  zero-padded input slab
    w_ref  : (Kt, Nt)  weight slab, pre-transposed to (K*L, O*J) layout
    uc_ref : (Kt, 1)   units repeated over in_dims (int32)
    us_ref : (1, Nt)   units_successor repeated over out_dims (int32)
    b_ref  : (1, Nt)   bias slab (f32)
    o_ref  : (Mt, Nt)  f32 output block, resident across the K grid axis
    """
    k = pl.program_id(2)

    @pl.when(k == 0)
    def _():
        o_ref[...] = jnp.zeros_like(o_ref)

    # Autoregressive mask rebuilt in-kernel from the tiny generator vectors:
    #   mask[row, col] = units_successor[col // out_dims] >= units[row // in_dims]
    mask = us_ref[...] >= uc_ref[...]                       # (Kt, Nt) via broadcast
    wm = jnp.where(mask, w_ref[...], jnp.zeros_like(w_ref[...]))
    # TODO(synk): on v5e, if xprof shows the masked-weight temp's stores binding
    # the single vst slot, split this into k sub-chunks (or drop k_tile to 256).
    o_ref[...] += jnp.dot(x_ref[...], wm, preferred_element_type=jnp.float32)

    @pl.when(k == pl.num_programs(2) - 1)
    def _():
        o_ref[...] += b_ref[...]


def prepare_mal_params(weight, bias):
    """ONE-TIME layout transform (parameter-init time, not per forward call).

    weight (O,J,K,L) -> (KLp, OJp) f32, transposed so the kernel runs a plain
    lane-dense (M,K)x(K,N) MXU matmul; bias (O,J) -> (1, OJp) f32.
    KLp/OJp are padded to multiples of 128 only.
    """
    O, J, K, L = weight.shape
    KL, OJ = K * L, O * J
    KLp, OJp = _round_up(KL, 128), _round_up(OJ, 128)
    w2 = jnp.zeros((KLp, OJp), jnp.float32).at[:KL, :OJ].set(
        weight.reshape(OJ, KL).T.astype(jnp.float32))
    b2 = jnp.zeros((1, OJp), jnp.float32).at[:, :OJ].set(
        bias.reshape(1, OJ).astype(jnp.float32))
    return w2, b2


def masked_autoregressive_linear(x, w2, b2, units, units_successor,
                                 out_features, out_dims,
                                 *, m_tile=256, n_tile=512, k_tile=512):
    """x: (B, K, L); w2/b2: pre-transposed & padded params from
    prepare_mal_params; units: (K,) int; units_successor: (O,) int
    -> (B, O, J)."""
    B, K, L = x.shape
    KLp, OJp = w2.shape
    KL = K * L
    O, J = out_features, out_dims
    OJ = O * J

    Bp = _round_up(B, 8)
    m_tile = _pick_tile(Bp, m_tile, 8)
    n_tile = _pick_tile(OJp, n_tile, 128)
    k_tile = _pick_tile(KLp, k_tile, 128)
    # v7x has 2 TensorCores: if both parallel axes would have extent 1, split N.
    if Bp // m_tile == 1 and OJp // n_tile == 1 and OJp >= 256:
        n_tile = _pick_tile(OJp, OJp // 2, 128)

    # --- cheap per-call glue: batch slab + tiny int mask-generator vectors ---
    x2 = jnp.zeros((Bp, KLp), jnp.float32).at[:B, :KL].set(
        x.reshape(B, KL).astype(jnp.float32))
    uc = jnp.zeros((KLp, 1), jnp.int32).at[:KL, 0].set(
        jnp.repeat(units.astype(jnp.int32), L))
    us = jnp.zeros((1, OJp), jnp.int32).at[0, :OJ].set(
        jnp.repeat(units_successor.astype(jnp.int32), J))

    grid = (Bp // m_tile, OJp // n_tile, KLp // k_tile)

    # Explicit VMEM budget: x/w/out double buffers + masked-weight temp + small
    # vectors, with 2x headroom; capped so it stays safe on v7x (64 MiB phys).
    est_bytes = 4 * (2 * m_tile * k_tile        # x double-buffer
                     + 3 * k_tile * n_tile      # weight double-buffer + wm temp
                     + 2 * m_tile * n_tile      # output double-buffer
                     + 4 * (k_tile + n_tile))   # mask vectors + bias
    vmem_limit = int(min(max(2 * est_bytes, 16 << 20), 48 << 20))

    out2 = pl.pallas_call(
        _mal_kernel,
        out_shape=jax.ShapeDtypeStruct((Bp, OJp), jnp.float32),
        grid_spec=pltpu.PrefetchScalarGridSpec(
            num_scalar_prefetch=0,
            grid=grid,
            in_specs=[
                pl.BlockSpec((m_tile, k_tile), lambda m, n, k: (m, k)),   # x
                pl.BlockSpec((k_tile, n_tile), lambda m, n, k: (k, n)),   # weight
                pl.BlockSpec((k_tile, 1), lambda m, n, k: (k, 0)),        # units col
                pl.BlockSpec((1, n_tile), lambda m, n, k: (0, n)),        # succ row
                pl.BlockSpec((1, n_tile), lambda m, n, k: (0, n)),        # bias
            ],
            out_specs=pl.BlockSpec((m_tile, n_tile), lambda m, n, k: (m, n)),
        ),
        compiler_params=pltpu.CompilerParams(
            dimension_semantics=("parallel", "parallel", "arbitrary"),
            vmem_limit_bytes=vmem_limit),
    )(x2, w2, uc, us, b2)

    return out2[:B, :OJ].reshape(B, O, J).astype(x.dtype)


@functools.partial(jax.jit, static_argnums=(5, 6, 7))
def forward(x, w2, b2, units, key, num_features, out_features, out_dims):
    """Module forward: samples units_successor (glue), runs the kernel.
    jit-safe: traced jnp.min(units) as the randint low (no host sync)."""
    units_successor = jax.random.randint(
        key, (out_features,), jnp.min(units), num_features, dtype=jnp.int32)
    out = masked_autoregressive_linear(x, w2, b2, units, units_successor,
                                       out_features, out_dims)
    # TODO(synk): weight_condition branch omitted — it defaults to None and its
    # 'i j k l -> i j' conditioning einsum with two operands is ill-formed.
    return out, units_successor


if __name__ == "__main__":
    # Small shapes consistent with the module's constructor.
    in_features, in_dims = 8, 2       # K, L
    out_features, out_dims = 16, 4    # O, J
    batch = 4                         # B
    num_features = 8

    key = jax.random.PRNGKey(0)
    k_w, k_x, k_u, k_s = jax.random.split(key, 4)

    # Deterministic "xavier_uniform_" init (torch fan conventions, 4-D tensor).
    fan_in = out_dims * in_features * in_dims
    fan_out = out_features * in_features * in_dims
    bound = math.sqrt(6.0 / (fan_in + fan_out))
    weight = jax.random.uniform(
        k_w, (out_features, out_dims, in_features, in_dims),
        minval=-bound, maxval=bound, dtype=jnp.float32)
    bias = jnp.zeros((out_features, out_dims), dtype=jnp.float32)

    # One-time parameter layout transform, hoisted out of the forward path.
    w2, b2 = prepare_mal_params(weight, bias)
    w2, b2 = jax.block_until_ready((w2, b2))

    x = jax.random.normal(k_x, (batch, in_features, in_dims), dtype=jnp.float32)
    units = jax.random.randint(k_u, (in_features,), 0, num_features,
                               dtype=jnp.int32)

    out, units_successor = forward(x, w2, b2, units, k_s,
                                   num_features, out_features, out_dims)
    out = jax.block_until_ready(out)

    # Pure-JAX reference (same einsum semantics as the PyTorch module).
    mask = (units_successor[:, None] >= units[None, :]).astype(jnp.float32)
    w_masked = jnp.einsum("ijkl,ik->ijkl", weight, mask)
    ref = jnp.einsum("ijkl,bkl->bij", w_masked, x) + bias[None]

    assert out.shape == (batch, out_features, out_dims)
    assert jnp.allclose(out, ref, atol=1e-5, rtol=1e-5), "mismatch vs reference"
    print("KERNEL_OK")
</pallas_src>

<mosaic_0001>
module attributes {stable_mosaic.version = 11 : i64} {
  func.func @_mal_kernel(%arg0: i32, %arg1: i32, %arg2: i32, %arg3: memref<8x128xf32, #tpu.memory_space<vmem>>, %arg4: memref<128x128xf32, #tpu.memory_space<vmem>>, %arg5: memref<128x1xi32, #tpu.memory_space<vmem>>, %arg6: memref<1x128xi32, #tpu.memory_space<vmem>>, %arg7: memref<1x128xf32, #tpu.memory_space<vmem>>, %arg8: memref<8x128xf32, #tpu.memory_space<vmem>>) attributes {dimension_semantics = [#tpu.dimension_semantics<parallel>, #tpu.dimension_semantics<parallel>, #tpu.dimension_semantics<arbitrary>], iteration_bounds = array<i64: 1, 1, 1>, scalar_prefetch = 0 : i64, scratch_operands = 0 : i64, tpu.core_type = #tpu.core_type<tc>, window_params = [{transform_indices = @transform_0, window_bounds = array<i64: 8, 128>}, {transform_indices = @transform_1, window_bounds = array<i64: 128, 128>}, {transform_indices = @transform_2, window_bounds = array<i64: 128, 1>}, {transform_indices = @transform_3, window_bounds = array<i64: 1, 128>}, {transform_indices = @transform_4, window_bounds = array<i64: 1, 128>}, {transform_indices = @transform_5, window_bounds = array<i64: 8, 128>}]} {
    %c0_i32 = arith.constant 0 : i32
    %0 = arith.cmpi eq, %arg2, %c0_i32 : i32
    %1 = arith.extui %0 : i1 to i32
    %c0_i32_0 = arith.constant 0 : i32
    %2 = arith.cmpi ne, %1, %c0_i32_0 : i32
    scf.if %2 {
      %cst_15 = arith.constant 0.000000e+00 : f32
      %19 = vector.broadcast %cst_15 : f32 to vector<8x128xf32>
      %c0_16 = arith.constant 0 : index
      %c0_17 = arith.constant 0 : index
      %20 = vector.load %arg8[%c0_16, %c0_17] : memref<8x128xf32, #tpu.memory_space<vmem>>, vector<8x128xf32>
      tpu.vector_store %arg8[%c0_16, %c0_17], %19 {strides = array<i32>} : memref<8x128xf32, #tpu.memory_space<vmem>>, vector<8x128xf32>,
    } else {
    }
    %c0 = arith.constant 0 : index
    %c0_1 = arith.constant 0 : index
    %3 = vector.load %arg6[%c0, %c0_1] : memref<1x128xi32, #tpu.memory_space<vmem>>, vector<1x128xi32>
    %c0_2 = arith.constant 0 : index
    %c0_3 = arith.constant 0 : index
    %4 = vector.load %arg5[%c0_2, %c0_3] : memref<128x1xi32, #tpu.memory_space<vmem>>, vector<128x1xi32>
    %5 = vector.broadcast %3 : vector<1x128xi32> to vector<128x128xi32>
    %6 = vector.broadcast %4 : vector<128x1xi32> to vector<128x128xi32>
    %7 = arith.cmpi sge, %5, %6 : vector<128x128xi32>
    %c0_4 = arith.constant 0 : index
    %c0_5 = arith.constant 0 : index
    %8 = vector.load %arg4[%c0_4, %c0_5] : memref<128x128xf32, #tpu.memory_space<vmem>>, vector<128x128xf32>
    %cst = arith.constant 0.000000e+00 : f32
    %9 = vector.broadcast %cst : f32 to vector<128x128xf32>
    %10 = arith.select %7, %8, %9 : vector<128x128xi1>, vector<128x128xf32>
    %c0_6 = arith.constant 0 : index
    %c0_7 = arith.constant 0 : index
    %11 = vector.load %arg8[%c0_6, %c0_7] : memref<8x128xf32, #tpu.memory_space<vmem>>, vector<8x128xf32>
    %c0_8 = arith.constant 0 : index
    %c0_9 = arith.constant 0 : index
    %12 = vector.load %arg3[%c0_8, %c0_9] : memref<8x128xf32, #tpu.memory_space<vmem>>, vector<8x128xf32>
    %cst_10 = arith.constant dense<0.000000e+00> : vector<8x128xf32>
    %13 = tpu.matmul %12, %10, %cst_10 {dimension_numbers = #tpu.dot_dimension_numbers<[1], [0], [0], [1], [0, 0, 1, 1], [], []>} : vector<8x128xf32>, vector<128x128xf32>, vector<8x128xf32> -> vector<8x128xf32>
    %14 = arith.addf %11, %13 : vector<8x128xf32>
    %c0_11 = arith.constant 0 : index
    %c0_12 = arith.constant 0 : index
    %15 = vector.load %arg8[%c0_11, %c0_12] : memref<8x128xf32, #tpu.memory_space<vmem>>, vector<8x128xf32>
    tpu.vector_store %arg8[%c0_11, %c0_12], %14 {strides = array<i32>} : memref<8x128xf32, #tpu.memory_space<vmem>>, vector<8x128xf32>,
    %c0_i32_13 = arith.constant 0 : i32
    %16 = arith.cmpi eq, %arg2, %c0_i32_13 : i32
    %17 = arith.extui %16 : i1 to i32
    %c0_i32_14 = arith.constant 0 : i32
    %18 = arith.cmpi ne, %17, %c0_i32_14 : i32
    scf.if %18 {
      %c0_15 = arith.constant 0 : index
      %c0_16 = arith.constant 0 : index
      %19 = vector.load %arg8[%c0_15, %c0_16] : memref<8x128xf32, #tpu.memory_space<vmem>>, vector<8x128xf32>
      %c0_17 = arith.constant 0 : index
      %c0_18 = arith.constant 0 : index
      %20 = vector.load %arg7[%c0_17, %c0_18] : memref<1x128xf32, #tpu.memory_space<vmem>>, vector<1x128xf32>
      %21 = vector.broadcast %20 : vector<1x128xf32> to vector<8x128xf32>
      %22 = arith.addf %19, %21 : vector<8x128xf32>
      %c0_19 = arith.constant 0 : index
      %c0_20 = arith.constant 0 : index
      %23 = vector.load %arg8[%c0_19, %c0_20] : memref<8x128xf32, #tpu.memory_space<vmem>>, vector<8x128xf32>
      tpu.vector_store %arg8[%c0_19, %c0_20], %22 {strides = array<i32>} : memref<8x128xf32, #tpu.memory_space<vmem>>, vector<8x128xf32>,
    } else {
    }
    return
  }
  func.func @transform_0(%arg0: i32, %arg1: i32, %arg2: i32) -> (i32, i32) {
    %c0_i32 = arith.constant 0 : i32
    return %arg0, %arg2 : i32, i32
  }
  func.func @transform_1(%arg0: i32, %arg1: i32, %arg2: i32) -> (i32, i32) {
    %c0_i32 = arith.constant 0 : i32
    return %arg2, %arg1 : i32, i32
  }
  func.func @transform_2(%arg0: i32, %arg1: i32, %arg2: i32) -> (i32, i32) {
    %c0_i32 = arith.constant 0 : i32
    %c0_i32_0 = arith.constant 0 : i32
    return %arg2, %c0_i32 : i32, i32
  }
  func.func @transform_3(%arg0: i32, %arg1: i32, %arg2: i32) -> (i32, i32) {
    %c0_i32 = arith.constant 0 : i32
    %c0_i32_0 = arith.constant 0 : i32
    return %c0_i32, %arg1 : i32, i32
  }
  func.func @transform_4(%arg0: i32, %arg1: i32, %arg2: i32) -> (i32, i32) {
    %c0_i32 = arith.constant 0 : i32
    %c0_i32_0 = arith.constant 0 : i32
    return %c0_i32, %arg1 : i32, i32
  }
  func.func @transform_5(%arg0: i32, %arg1: i32, %arg2: i32) -> (i32, i32) {
    %c0_i32 = arith.constant 0 : i32
    return %arg0, %arg1 : i32, i32
  }
}

</mosaic_0001>

<llo_original>
// kernel: forward.1
$region0: #{forward.1}
  #allocation0 [shape = 'u32[]', space=smem, size = 0x4, offset = 0x4, fixed_abs, tag = 'smem constant byte address 0x4 - core index']
  #allocation1 [shape = 'u32[144,128]{1,0:T(1,128)}', space=vmem, size = 0x12000, scoped, tag = 'internal scratch']
  %s0 = inlined_call_operand.vmem [shape: f32[8,128], index: 0, kind: input, shape index: {}]
  %s1 = inlined_call_operand.vmem [shape: f32[128,128], index: 1, kind: input, shape index: {}]
  %s2 = inlined_call_operand.vmem [shape: s32[128,1], index: 2, kind: input, shape index: {}]
  %s3 = inlined_call_operand.vmem [shape: s32[1,128], index: 3, kind: input, shape index: {}]
  %s4 = inlined_call_operand.vmem [shape: f32[1,128], index: 4, kind: input, shape index: {}]
  %s5 = inlined_call_operand.vmem [shape: f32[8,128], index: 5, kind: output, shape index: {}]
  %s6 = sld [smem:[#allocation0]]
  $region38: #{forward.1} parent=0
    _
  %s8 = ssub.s32 1, %s6
  %s9 = scalar_select 0, %s8, %s6
  // Predicated region
  $region2: #{forward.1} parent=0 // pred_check
    _
  $region3: #{forward.1} parent=0 // pred_check_branch
    %11 = sbr.rel (0) target = $region5
  $region4: #{forward.1} parent=0 // pred_region
    _
  $region5: #{forward.1} parent=0 // pred_fallthru
    _
  // Predicated region
  $region6: #{forward.1} parent=0 // pred_check
    _
  $region7: #{forward.1} parent=0 // pred_check_branch
    %13 = sbr.rel (0) target = $region9
  $region8: #{forward.1} parent=0 // pred_region
    _
  $region9: #{forward.1} parent=0 // pred_fallthru
    _
  // Predicated region
  $region10: #{forward.1} parent=0 // pred_check
    _
  $region11: #{forward.1} parent=0 // pred_check_branch
    %15 = sbr.rel (0) target = $region13
  $region12: #{forward.1} parent=0 // pred_region
    _
  $region13: #{forward.1} parent=0 // pred_fallthru
    _
  // Predicated region
  $region14: #{forward.1} parent=0 // pred_check
    _
  $region15: #{forward.1} parent=0 // pred_check_branch
    %17 = sbr.rel (0) target = $region17
  $region16: #{forward.1} parent=0 // pred_region
    _
  $region17: #{forward.1} parent=0 // pred_fallthru
    _
  // Predicated region
  $region18: #{forward.1} parent=0 // pred_check
    _
  $region19: #{forward.1} parent=0 // pred_check_branch
    %19 = sbr.rel (0) target = $region21
  $region20: #{forward.1} parent=0 // pred_region
    _
  $region21: #{forward.1} parent=0 // pred_fallthru
    _
  %p20 = scmp.eq.s32.totalorder 0, 0
  // Predicated region
  $region22: #{forward.1} parent=0 // pred_check
    %p21 = pneg %p20
  $region23: #{forward.1} parent=0 // pred_check_branch
    %23 = sbr.rel (%p21) target = $region25
  $region24: #{forward.1} parent=0 // pred_region
    %24 = vst [vmem:[%s5] sm:$0xff] 0.0
  $region25: #{forward.1} parent=0 // pred_fallthru
    _
  %v25 = vld [vmem:[%s3] sm:$0x1]
  %v26 = vld [vmem:[%s2] sm:$0xff]
  %v27 = vld [vmem:[%s2 + $0x8] sm:$0xff]
  %v28 = vld [vmem:[%s2 + $0x10] sm:$0xff]
  %v29 = vld [vmem:[%s2 + $0x18] sm:$0xff]
  %v30 = vld [vmem:[%s2 + $0x20] sm:$0xff]
  %v31 = vld [vmem:[%s2 + $0x28] sm:$0xff]
  %v32 = vld [vmem:[%s2 + $0x30] sm:$0xff]
  %v33 = vld [vmem:[%s2 + $0x38] sm:$0xff]
  %v34 = vld [vmem:[%s2 + $0x40] sm:$0xff]
  %v35 = vld [vmem:[%s2 + $0x48] sm:$0xff]
  %v36 = vld [vmem:[%s2 + $0x50] sm:$0xff]
  %v37 = vld [vmem:[%s2 + $0x58] sm:$0xff]
  %v38 = vld [vmem:[%s2 + $0x60] sm:$0xff]
  %v39 = vld [vmem:[%s2 + $0x68] sm:$0xff]
  %v40 = vld [vmem:[%s2 + $0x70] sm:$0xff]
  %v41 = vld [vmem:[%s2 + $0x78] sm:$0xff]
  %v42 = vlaneseq
  %v43 = vshrl.u32 %v42, 7
  %v44 = vsub.s32 0, %v43
  %v45 = vrot.slane %v25, %v44
  %46 = vset.pattern.permute.xlu0 0
  %47 = vperm.xlu0 %46, %v26
  %v48 = vpop.permute.xlu0 %47
  %49 = vset.pattern.permute.xlu0 0
  %50 = vperm.xlu0 %49, %v27
  %v51 = vpop.permute.xlu0 %50
  %52 = vset.pattern.permute.xlu0 0
  %53 = vperm.xlu0 %52, %v28
  %v54 = vpop.permute.xlu0 %53
  %55 = vset.pattern.permute.xlu0 0
  %56 = vperm.xlu0 %55, %v29
  %v57 = vpop.permute.xlu0 %56
  %58 = vset.pattern.permute.xlu0 0
  %59 = vperm.xlu0 %58, %v30
  %v60 = vpop.permute.xlu0 %59
  %61 = vset.pattern.permute.xlu0 0
  %62 = vperm.xlu0 %61, %v31
  %v63 = vpop.permute.xlu0 %62
  %64 = vset.pattern.permute.xlu0 0
  %65 = vperm.xlu0 %64, %v32
  %v66 = vpop.permute.xlu0 %65
  %67 = vset.pattern.permute.xlu0 0
  %68 = vperm.xlu0 %67, %v33
  %v69 = vpop.permute.xlu0 %68
  %70 = vset.pattern.permute.xlu0 0
  %71 = vperm.xlu0 %70, %v34
  %v72 = vpop.permute.xlu0 %71
  %73 = vset.pattern.permute.xlu0 0
  %74 = vperm.xlu0 %73, %v35
  %v75 = vpop.permute.xlu0 %74
  %76 = vset.pattern.permute.xlu0 0
  %77 = vperm.xlu0 %76, %v36
  %v78 = vpop.permute.xlu0 %77
  %79 = vset.pattern.permute.xlu0 0
  %80 = vperm.xlu0 %79, %v37
  %v81 = vpop.permute.xlu0 %80
  %82 = vset.pattern.permute.xlu0 0
  %83 = vperm.xlu0 %82, %v38
  %v84 = vpop.permute.xlu0 %83
  %85 = vset.pattern.permute.xlu0 0
  %86 = vperm.xlu0 %85, %v39
  %v87 = vpop.permute.xlu0 %86
  %88 = vset.pattern.permute.xlu0 0
  %89 = vperm.xlu0 %88, %v40
  %v90 = vpop.permute.xlu0 %89
  %91 = vset.pattern.permute.xlu0 0
  %92 = vperm.xlu0 %91, %v41
  %v93 = vpop.permute.xlu0 %92
  %vm94 = vcmp.ge.s32.totalorder %v45, %v48
  %vm95 = vcmp.ge.s32.totalorder %v45, %v51
  %vm96 = vcmp.ge.s32.totalorder %v45, %v54
  %vm97 = vcmp.ge.s32.totalorder %v45, %v57
  %vm98 = vcmp.ge.s32.totalorder %v45, %v60
  %vm99 = vcmp.ge.s32.totalorder %v45, %v63
  %vm100 = vcmp.ge.s32.totalorder %v45, %v66
  %vm101 = vcmp.ge.s32.totalorder %v45, %v69
  %vm102 = vcmp.ge.s32.totalorder %v45, %v72
  %vm103 = vcmp.ge.s32.totalorder %v45, %v75
  %vm104 = vcmp.ge.s32.totalorder %v45, %v78
  %vm105 = vcmp.ge.s32.totalorder %v45, %v81
  %vm106 = vcmp.ge.s32.totalorder %v45, %v84
  %vm107 = vcmp.ge.s32.totalorder %v45, %v87
  %vm108 = vcmp.ge.s32.totalorder %v45, %v90
  %vm109 = vcmp.ge.s32.totalorder %v45, %v93
  %v110 = vld [vmem:[%s1] sm:$0xff]
  %v111 = vld [vmem:[%s1 + $0x8] sm:$0xff]
  %v112 = vld [vmem:[%s1 + $0x10] sm:$0xff]
  %v113 = vld [vmem:[%s1 + $0x18] sm:$0xff]
  %v114 = vld [vmem:[%s1 + $0x20] sm:$0xff]
  %v115 = vld [vmem:[%s1 + $0x28] sm:$0xff]
  %v116 = vld [vmem:[%s1 + $0x30] sm:$0xff]
  %v117 = vld [vmem:[%s1 + $0x38] sm:$0xff]
  %v118 = vld [vmem:[%s1 + $0x40] sm:$0xff]
  %v119 = vld [vmem:[%s1 + $0x48] sm:$0xff]
  %v120 = vld [vmem:[%s1 + $0x50] sm:$0xff]
  %v121 = vld [vmem:[%s1 + $0x58] sm:$0xff]
  %v122 = vld [vmem:[%s1 + $0x60] sm:$0xff]
  %v123 = vld [vmem:[%s1 + $0x68] sm:$0xff]
  %v124 = vld [vmem:[%s1 + $0x70] sm:$0xff]
  %v125 = vld [vmem:[%s1 + $0x78] sm:$0xff]
  %v126 = vsel %vm94, %v110, 0.0
  %v127 = vsel %vm95, %v111, 0.0
  %v128 = vsel %vm96, %v112, 0.0
  %v129 = vsel %vm97, %v113, 0.0
  %v130 = vsel %vm98, %v114, 0.0
  %v131 = vsel %vm99, %v115, 0.0
  %v132 = vsel %vm100, %v116, 0.0
  %v133 = vsel %vm101, %v117, 0.0
  %v134 = vsel %vm102, %v118, 0.0
  %v135 = vsel %vm103, %v119, 0.0
  %v136 = vsel %vm104, %v120, 0.0
  %v137 = vsel %vm105, %v121, 0.0
  %v138 = vsel %vm106, %v122, 0.0
  %v139 = vsel %vm107, %v123, 0.0
  %v140 = vsel %vm108, %v124, 0.0
  %v141 = vsel %vm109, %v125, 0.0
  %v142 = vld [vmem:[%s5] sm:$0xff]
  %v143 = vld [vmem:[%s0] sm:$0xff]
  %144 = vmatprep.subr.mxu0 0.0
  %145 = vmatpush1.msra.mxu0 %v126
  %146 = vmatprep.subr.mxu0 0.0
  %147 = vmatpush1.msra.mxu0 %v127
  %148 = vmatprep.subr.mxu0 0.0
  %149 = vmatpush1.msra.mxu0 %v128
  %150 = vmatprep.subr.mxu0 0.0
  %151 = vmatpush1.msra.mxu0 %v129
  %152 = vmatprep.subr.mxu0 0.0
  %153 = vmatpush1.msra.mxu0 %v130
  %154 = vmatprep.subr.mxu0 0.0
  %155 = vmatpush1.msra.mxu0 %v131
  %156 = vmatprep.subr.mxu0 0.0
  %157 = vmatpush1.msra.mxu0 %v132
  %158 = vmatprep.subr.mxu0 0.0
  %159 = vmatpush1.msra.mxu0 %v133
  %160 = vmatprep.subr.mxu0 0.0
  %161 = vmatpush1.msra.mxu0 %v134
  %162 = vmatprep.subr.mxu0 0.0
  %163 = vmatpush1.msra.mxu0 %v135
  %164 = vmatprep.subr.mxu0 0.0
  %165 = vmatpush1.msra.mxu0 %v136
  %166 = vmatprep.subr.mxu0 0.0
  %167 = vmatpush1.msra.mxu0 %v137
  %168 = vmatprep.subr.mxu0 0.0
  %169 = vmatpush1.msra.mxu0 %v138
  %170 = vmatprep.subr.mxu0 0.0
  %171 = vmatpush1.msra.mxu0 %v139
  %172 = vmatprep.subr.mxu0 0.0
  %173 = vmatpush1.msra.mxu0 %v140
  %174 = vmatprep.subr.mxu0 0.0
  %175 = vmatpush1.msra.mxu0 %v141
  %176 = vmatprep.subr.mxu0 0.0
  %177 = vmatpush1.msra.mxu0 0.0
  %178 = vmatprep.subr.mxu0 0.0
  %179 = vmatpush1.msra.mxu0 0.0
  %180 = vmatprep.subr.mxu0 0.0
  %181 = vmatpush1.msra.mxu0 0.0
  %182 = vmatprep.subr.mxu0 0.0
  %183 = vmatpush1.msra.mxu0 0.0
  %184 = vmatprep.subr.mxu0 0.0
  %185 = vmatpush1.msra.mxu0 0.0
  %186 = vmatprep.subr.mxu0 0.0
  %187 = vmatpush1.msra.mxu0 0.0
  %188 = vmatprep.subr.mxu0 0.0
  %189 = vmatpush1.msra.mxu0 0.0
  %190 = vmatprep.subr.mxu0 0.0
  %191 = vmatpush1.msra.mxu0 0.0
  %192 = vmatprep.subr.mxu0 0.0
  %193 = vmatpush1.msra.mxu0 0.0
  %194 = vmatprep.subr.mxu0 0.0
  %195 = vmatpush1.msra.mxu0 0.0
  %196 = vmatprep.subr.mxu0 0.0
  %197 = vmatpush1.msra.mxu0 0.0
  %198 = vmatprep.subr.mxu0 0.0
  %199 = vmatpush1.msra.mxu0 0.0
  %200 = vmatprep.subr.mxu0 0.0
  %201 = vmatpush1.msra.mxu0 0.0
  %202 = vmatprep.subr.mxu0 0.0
  %203 = vmatpush1.msra.mxu0 0.0
  %204 = vmatprep.subr.mxu0 0.0
  %205 = vmatpush1.msra.mxu0 0.0
  %206 = vmatprep.subr.mxu0 0.0
  %207 = vmatpush1.msra.mxu0 0.0
  %208 = vmatprep.mubr.f32.mxu0 0.0
  %209 = vmatmul.mubr.f32.gmra.mrb[0].mxu0 %v143
  %v210 = vpop.f32.mrb[0].mxu0
  %v211 = vadd.f32 0.0, %v210
  %v212 = vpop.f32.mrb[0].mxu0
  %213 = vdwg.mxu0
  %v214 = vadd.f32 %v142, %v211
  %215 = vst [vmem:[%s5] sm:$0xff] %v214
  // Predicated region
  $region26: #{forward.1} parent=0 // pred_check
    %p216 = pneg %p20
  $region27: #{forward.1} parent=0 // pred_check_branch
    %218 = sbr.rel (%p216) target = $region29
  $region28: #{forward.1} parent=0 // pred_region
    %v219 = vld [vmem:[%s5] sm:$0xff]
    %v220 = vld [vmem:[%s4] sm:$0x1]
    %v222 = vlaneseq
    %v223 = vshrl.u32 %v222, 7
    %v224 = vsub.s32 0, %v223
    %v225 = vrot.slane %v220, %v224
    %v227 = vadd.f32 %v219, %v225
    %228 = vst [vmem:[%s5] sm:$0xff] %v227
  $region29: #{forward.1} parent=0 // pred_fallthru
    _
  // Predicated region
  $region30: #{forward.1} parent=0 // pred_check
    _
  $region31: #{forward.1} parent=0 // pred_check_branch
    %230 = sbr.rel (0) target = $region33
  $region32: #{forward.1} parent=0 // pred_region
    _
  $region33: #{forward.1} parent=0 // pred_fallthru
    _
  // Predicated region
  $region34: #{forward.1} parent=0 // pred_check
    _
  $region35: #{forward.1} parent=0 // pred_check_branch
    %232 = sbr.rel (0) target = $region37
  $region36: #{forward.1} parent=0 // pred_region
    _
  $region37: #{forward.1} parent=0 // pred_fallthru
    _

</llo_original>
